<compile_context>
chip_gen: v6e
topology: v6e:2x2x1
jax: 0.10.0
libtpu: 0.0.40
codegen_flags: <defaults>
</compile_context>

<pallas_src>
import functools
import math

import jax
import jax.numpy as jnp
from jax.experimental import pallas as pl
from jax.experimental.pallas import tpu as pltpu


_SMALL_FALLBACK_BYTES = 256 * 1024      # below this, native concat wins


def _itemsize(dt):
    return jnp.dtype(dt).itemsize


def _round_up(x, m):
    return ((x + m - 1) // m) * m


def _vmem_limit_bytes():
    """Scoped VMEM limit: ~3/4 of physical (96 MiB on v5e/v6e, 48 MiB on v7x)."""
    cap = 64 * 1024 * 1024
    try:
        cap = int(pltpu.get_tpu_info().vmem_capacity_bytes)
    except Exception:
        pass
    return min((cap * 3) // 4, 96 * 1024 * 1024)


# ------------------------------- kernels ------------------------------------

def _concat_rows_kernel(*refs, widths, aligned):
    """2-D tiles: in_i = (rows_tile, w_i), out = (rows_tile, sum(w_i))."""
    in_refs = refs[:-1]
    out_ref = refs[-1]
    if aligned:
        # Every lane offset is a multiple of 128 -> unmasked lane-dense stores.
        off = 0
        for r, w in zip(in_refs, widths):
            out_ref[:, off:off + w] = r[...].astype(out_ref.dtype)
            off += w
    else:
        # Arbitrary lane offsets: assemble the tile in-register (XLU/VPU work,
        # off the store critical path) and issue one lane-dense full-tile store
        # instead of N masked partial stores on the single vst slot.
        parts = [r[...].astype(out_ref.dtype) for r in in_refs]
        out_ref[...] = jnp.concatenate(parts, axis=-1)


def _concat_mid_kernel(*refs, sizes):
    """3-D tiles: in_i = (pre_tile, n_i, post), out = (pre_tile, sum(n_i), post)."""
    in_refs = refs[:-1]
    out_ref = refs[-1]
    off = 0
    for r, n in zip(in_refs, sizes):
        out_ref[:, off:off + n, :] = r[...].astype(out_ref.dtype)
        off += n


def _concat_dma_kernel(*refs, offsets, widths):
    """Same-dtype fast path: strided HBM->HBM DMA of each input directly into
    its column slice of the output.  No TensorCore / VMEM round trip."""
    n = len(widths)
    in_refs = refs[:n]
    out_ref = refs[n]
    sem = refs[n + 1]
    copies = []
    for i, (r, off, w) in enumerate(zip(in_refs, offsets, widths)):
        cp = pltpu.make_async_copy(r, out_ref.at[:, off:off + w], sem.at[i])
        cp.start()
        copies.append(cp)
    for cp in copies:
        cp.wait()


# --------------------------- tile-size helpers -------------------------------

def _row_tile(rows, per_row_bytes, budget_bytes):
    """Rows per grid step: bound by the double-buffered VMEM byte budget, but
    keep >= 2 (>= 4) grid steps so the row loop can shard across v7x's TCs."""
    cap = budget_bytes // max(2 * per_row_bytes, 1)
    cap = max(8, (cap // 8) * 8)
    if rows >= 64:
        min_steps = 4
    elif rows >= 16:
        min_steps = 2
    else:
        min_steps = 1
    steps_cap = _round_up(math.ceil(rows / min_steps), 8)
    tr = min(cap, steps_cap)
    if tr >= rows:
        tr = rows                      # full extent (valid even if not % 8)
    return tr


def _pre_tile(pre, per_pre_bytes, budget_bytes):
    cap = max(1, budget_bytes // max(2 * per_pre_bytes, 1))
    if pre >= 16:
        min_steps = 4
    elif pre >= 4:
        min_steps = 2
    else:
        min_steps = 1
    steps_cap = max(1, math.ceil(pre / min_steps))
    return max(1, min(cap, steps_cap, pre))


# ------------------------------- wrapper -------------------------------------

def pallas_concatenate(xs, dim=-1):
    """torch.cat(xs, dim=dim) equivalent using Pallas TPU kernels."""
    xs = [jnp.asarray(x) for x in xs]
    if len(xs) == 0:
        raise ValueError("pallas_concatenate needs at least one input")
    ndim = xs[0].ndim
    if ndim == 0:
        raise ValueError("zero-dimensional arrays cannot be concatenated")
    axis = dim % ndim

    other_dims = xs[0].shape[:axis] + xs[0].shape[axis + 1:]
    for x in xs[1:]:
        if x.ndim != ndim or (x.shape[:axis] + x.shape[axis + 1:]) != other_dims:
            raise ValueError("all inputs must match on non-concatenated dims")

    # TODO(synk): jnp.result_type may differ from torch.cat promotion for some
    # exotic mixed integer/float combos; matches the common cases used here.
    out_dtype = jnp.result_type(*[x.dtype for x in xs])
    sizes = [int(x.shape[axis]) for x in xs]
    total = int(sum(sizes))
    out_full_shape = xs[0].shape[:axis] + (total,) + xs[0].shape[axis + 1:]

    # ---- degenerate / tiny cases --------------------------------------------
    if total == 0 or math.prod(other_dims) == 0:
        return jnp.zeros(out_full_shape, out_dtype)

    keep = [(x, s) for x, s in zip(xs, sizes) if s > 0]   # torch.cat accepts empties
    xs = [x for x, _ in keep]
    sizes = [s for _, s in keep]
    if len(xs) == 1:
        return xs[0].astype(out_dtype)

    out_nbytes = math.prod(out_full_shape) * _itemsize(out_dtype)
    if out_nbytes <= _SMALL_FALLBACK_BYTES:
        # Kernel-launch + per-step overhead loses to native concat here.
        return jnp.concatenate([x.astype(out_dtype) for x in xs], axis=axis)

    pre = int(math.prod(xs[0].shape[:axis]))
    post = int(math.prod(xs[0].shape[axis + 1:]))

    vmem_limit = _vmem_limit_bytes()
    budget = max(vmem_limit - (4 << 20), 8 << 20)

    # ---- lane-folded 2-D path (axis is last, or trailing dims fold to lanes) --
    if post == 1 or post % 128 == 0:
        rows = pre
        widths = [s * post for s in sizes]
        total_w = total * post
        xs2 = [x.reshape(rows, w) for x, w in zip(xs, widths)]   # free reshape
        offsets = []
        off = 0
        for w in widths:
            offsets.append(off)
            off += w

        if total_w < 128:
            # Lane-sparse output -> masked stores everywhere; native concat wins.
            return jnp.concatenate([x.astype(out_dtype) for x in xs], axis=axis)

        # Same-dtype, 128-aligned widths: pure HBM->HBM DMA placement.
        if (all(x.dtype == out_dtype for x in xs2)
                and all(w % 128 == 0 for w in widths)):
            out = pl.pallas_call(
                functools.partial(_concat_dma_kernel,
                                  offsets=tuple(offsets), widths=tuple(widths)),
                out_shape=jax.ShapeDtypeStruct((rows, total_w), out_dtype),
                in_specs=[pl.BlockSpec(memory_space=pl.ANY)] * len(xs2),
                out_specs=pl.BlockSpec(memory_space=pl.ANY),
                scratch_shapes=[pltpu.SemaphoreType.DMA((len(xs2),))],
                compiler_params=pltpu.CompilerParams(has_side_effects=True),
            )(*xs2)
            return out.reshape(out_full_shape)

        per_row = (sum(w * _itemsize(x.dtype) for x, w in zip(xs2, widths))
                   + 2 * total_w * _itemsize(out_dtype))
        if 2 * per_row * 8 > budget:
            # TODO(synk): lane-tile extremely wide rows instead of falling back.
            return jnp.concatenate([x.astype(out_dtype) for x in xs], axis=axis)

        tr = _row_tile(rows, per_row, budget)
        aligned = all(o % 128 == 0 for o in offsets)
        kernel = functools.partial(_concat_rows_kernel,
                                   widths=tuple(widths), aligned=aligned)
        in_specs = [pl.BlockSpec((tr, w), lambda i: (i, 0)) for w in widths]
        out_specs = pl.BlockSpec((tr, total_w), lambda i: (i, 0))
        grid = (pl.cdiv(rows, tr),)
        out_shape = jax.ShapeDtypeStruct((rows, total_w), out_dtype)
    else:
        # ---- residual 3-D path: middle-axis concat, post not lane-foldable ----
        xs2 = [x.reshape(pre, s, post) for x, s in zip(xs, sizes)]   # free reshape
        per_pre = (sum(s * post * _itemsize(x.dtype) for x, s in zip(xs2, sizes))
                   + 2 * total * post * _itemsize(out_dtype))
        if 2 * per_pre > budget:
            # TODO(synk): add a second grid axis tiling `post` for huge middle-axis concats.
            return jnp.concatenate([x.astype(out_dtype) for x in xs], axis=axis)

        tp = _pre_tile(pre, per_pre, budget)
        kernel = functools.partial(_concat_mid_kernel, sizes=tuple(sizes))
        in_specs = [pl.BlockSpec((tp, s, post), lambda i: (i, 0, 0)) for s in sizes]
        out_specs = pl.BlockSpec((tp, total, post), lambda i: (i, 0, 0))
        grid = (pl.cdiv(pre, tp),)
        out_shape = jax.ShapeDtypeStruct((pre, total, post), out_dtype)

    in_bytes = sum(int(x.size) * _itemsize(x.dtype) for x in xs2)
    out_bytes = math.prod(out_shape.shape) * _itemsize(out_dtype)

    out = pl.pallas_call(
        kernel,
        out_shape=out_shape,
        grid=grid,
        in_specs=in_specs,
        out_specs=out_specs,
        compiler_params=pltpu.CompilerParams(
            dimension_semantics=("parallel",),
            vmem_limit_bytes=vmem_limit,
        ),
        cost_estimate=pl.CostEstimate(
            flops=0, transcendentals=0, bytes_accessed=in_bytes + out_bytes),
    )(*xs2)
    return out.reshape(out_full_shape)


class Concatenation:
    """Mirror of the PyTorch module (no parameters)."""

    def __init__(self, dim=-1):
        self.dim = dim

    def __call__(self, *xs):
        return pallas_concatenate(xs, dim=self.dim)


if __name__ == "__main__":
    key = jax.random.PRNGKey(0)
    ks = jax.random.split(key, 8)

    # 1) Text-CNN-head style small shapes (tiny output -> native fallback path).
    x1 = jax.random.normal(ks[0], (2, 8, 16), dtype=jnp.float32)
    x2 = jax.random.normal(ks[1], (2, 8, 32), dtype=jnp.float32)
    x3 = jax.random.normal(ks[2], (2, 8, 16), dtype=jnp.float32)
    out = jax.block_until_ready(Concatenation(dim=-1)(x1, x2, x3))
    ref = jnp.concatenate([x1, x2, x3], axis=-1)
    assert out.shape == ref.shape and out.dtype == ref.dtype
    assert bool(jnp.all(out == ref))

    # 2) Last-axis, same dtype, 128-multiple widths -> HBM->HBM DMA fast path.
    a = jax.random.normal(ks[3], (1024, 256), dtype=jnp.float32)
    b = jax.random.normal(ks[4], (1024, 384), dtype=jnp.float32)
    out = jax.block_until_ready(Concatenation(-1)(a, b))
    ref = jnp.concatenate([a, b], axis=-1)
    assert out.shape == ref.shape and out.dtype == ref.dtype
    assert bool(jnp.all(out == ref))

    # 3) Last-axis, mixed dtype, unaligned widths -> tiled VMEM kernel with
    #    in-register assembly + single lane-dense store (fused cast).
    c = jax.random.normal(ks[5], (1024, 192), dtype=jnp.float32)
    d = jax.random.normal(ks[6], (1024, 320), dtype=jnp.float32).astype(jnp.bfloat16)
    out = jax.block_until_ready(Concatenation(-1)(c, d))
    ref = jnp.concatenate([c, d], axis=-1)
    assert out.shape == ref.shape and out.dtype == ref.dtype
    assert bool(jnp.all(out == ref))

    # 4) Middle-axis concat with post % 128 == 0 -> folded lane-dense 2-D path
    #    (mixed dtype keeps it on the tiled VMEM kernel, aligned stores).
    y1 = jax.random.normal(ks[7], (64, 12, 256), dtype=jnp.float32)
    y2 = jax.random.normal(ks[0], (64, 20, 256), dtype=jnp.float32).astype(jnp.bfloat16)
    out = jax.block_until_ready(Concatenation(dim=1)(y1, y2))
    ref = jnp.concatenate([y1, y2], axis=1)
    assert out.shape == ref.shape and out.dtype == ref.dtype
    assert bool(jnp.all(out == ref))

    # 5) Middle-axis concat with post % 128 != 0 -> residual 3-D kernel path.
    z1 = jax.random.normal(ks[1], (512, 3, 96), dtype=jnp.float32)
    z2 = jax.random.normal(ks[2], (512, 5, 96), dtype=jnp.float32)
    out = jax.block_until_ready(Concatenation(dim=1)(z1, z2))
    ref = jnp.concatenate([z1, z2], axis=1)
    assert out.shape == ref.shape and out.dtype == ref.dtype
    assert bool(jnp.all(out == ref))

    print("KERNEL_OK")
</pallas_src>

<mosaic_0001>
module attributes {stable_mosaic.version = 11 : i64} {
  func.func @_concat_dma_kernel(%arg0: memref<1024x256xf32, #tpu.memory_space<any>>, %arg1: memref<1024x384xf32, #tpu.memory_space<any>>, %arg2: memref<1024x640xf32, #tpu.memory_space<any>>, %arg3: memref<2x!tpu.dma_semaphore, #tpu.memory_space<semaphore_mem>>) attributes {dimension_semantics = [], scalar_prefetch = 0 : i64, scratch_operands = 1 : i64, tpu.core_type = #tpu.core_type<tc>} {
    %c0_i32 = arith.constant 0 : i32
    %c0_i32_0 = arith.constant 0 : i32
    %c0_i32_1 = arith.constant 0 : i32
    %0 = tpu.memref_slice %arg2[%c0_i32_0, %c0_i32_1] : memref<1024x640xf32, #tpu.memory_space<any>> -> memref<1024x256xf32, #tpu.memory_space<any>>
    %1 = tpu.memref_slice %arg3[%c0_i32] : memref<2x!tpu.dma_semaphore, #tpu.memory_space<semaphore_mem>> -> memref<1x!tpu.dma_semaphore, #tpu.memory_space<semaphore_mem>>
    %2 = tpu.memref_squeeze %1 : memref<1x!tpu.dma_semaphore, #tpu.memory_space<semaphore_mem>> -> memref<!tpu.dma_semaphore, #tpu.memory_space<semaphore_mem>>
    tpu.enqueue_dma source(%arg0 : memref<1024x256xf32, #tpu.memory_space<any>>) target(%0 : memref<1024x256xf32, #tpu.memory_space<any>>) target_semaphore(%2 : memref<!tpu.dma_semaphore, #tpu.memory_space<semaphore_mem>>)
    %c1_i32 = arith.constant 1 : i32
    %c0_i32_2 = arith.constant 0 : i32
    %c256_i32 = arith.constant 256 : i32
    %3 = tpu.memref_slice %arg2[%c0_i32_2, %c256_i32] : memref<1024x640xf32, #tpu.memory_space<any>> -> memref<1024x384xf32, #tpu.memory_space<any>>
    %4 = tpu.memref_slice %arg3[%c1_i32] : memref<2x!tpu.dma_semaphore, #tpu.memory_space<semaphore_mem>> -> memref<1x!tpu.dma_semaphore, #tpu.memory_space<semaphore_mem>>
    %5 = tpu.memref_squeeze %4 : memref<1x!tpu.dma_semaphore, #tpu.memory_space<semaphore_mem>> -> memref<!tpu.dma_semaphore, #tpu.memory_space<semaphore_mem>>
    tpu.enqueue_dma source(%arg1 : memref<1024x384xf32, #tpu.memory_space<any>>) target(%3 : memref<1024x384xf32, #tpu.memory_space<any>>) target_semaphore(%5 : memref<!tpu.dma_semaphore, #tpu.memory_space<semaphore_mem>>)
    %c0_i32_3 = arith.constant 0 : i32
    %c0_i32_4 = arith.constant 0 : i32
    %c0_i32_5 = arith.constant 0 : i32
    %6 = tpu.memref_slice %arg2[%c0_i32_4, %c0_i32_5] : memref<1024x640xf32, #tpu.memory_space<any>> -> memref<1024x256xf32, #tpu.memory_space<any>>
    %7 = tpu.memref_slice %arg3[%c0_i32_3] : memref<2x!tpu.dma_semaphore, #tpu.memory_space<semaphore_mem>> -> memref<1x!tpu.dma_semaphore, #tpu.memory_space<semaphore_mem>>
    %8 = tpu.memref_squeeze %7 : memref<1x!tpu.dma_semaphore, #tpu.memory_space<semaphore_mem>> -> memref<!tpu.dma_semaphore, #tpu.memory_space<semaphore_mem>>
    tpu.wait_dma2 semaphore(%8 : memref<!tpu.dma_semaphore, #tpu.memory_space<semaphore_mem>>) src(%arg0 : memref<1024x256xf32, #tpu.memory_space<any>>) dst(%6 : memref<1024x256xf32, #tpu.memory_space<any>>)
    %c1_i32_6 = arith.constant 1 : i32
    %c0_i32_7 = arith.constant 0 : i32
    %c256_i32_8 = arith.constant 256 : i32
    %9 = tpu.memref_slice %arg2[%c0_i32_7, %c256_i32_8] : memref<1024x640xf32, #tpu.memory_space<any>> -> memref<1024x384xf32, #tpu.memory_space<any>>
    %10 = tpu.memref_slice %arg3[%c1_i32_6] : memref<2x!tpu.dma_semaphore, #tpu.memory_space<semaphore_mem>> -> memref<1x!tpu.dma_semaphore, #tpu.memory_space<semaphore_mem>>
    %11 = tpu.memref_squeeze %10 : memref<1x!tpu.dma_semaphore, #tpu.memory_space<semaphore_mem>> -> memref<!tpu.dma_semaphore, #tpu.memory_space<semaphore_mem>>
    tpu.wait_dma2 semaphore(%11 : memref<!tpu.dma_semaphore, #tpu.memory_space<semaphore_mem>>) src(%arg1 : memref<1024x384xf32, #tpu.memory_space<any>>) dst(%9 : memref<1024x384xf32, #tpu.memory_space<any>>)
    return
  }
}

</mosaic_0001>

<llo_original>
// kernel: tpu_custom_call.1
$region0: #{tpu_custom_call.1}
  #allocation0 [shape = 'u32[]', space=smem, size = 0x4, offset = 0x4, fixed_abs, tag = 'smem constant byte address 0x4 - core index']
  #allocation1 [shape = 'u32[144,128]{1,0:T(1,128)}', space=vmem, size = 0x12000, scoped, tag = 'internal scratch']
  #allocation2 [shape = 's32[2]{0}', space=sflag, size = 0x8, scoped, tag = 'scratch operand']
  #allocation3 [shape = 's32[]', space=sflag, size = 0x4, offset = 0, fixed_abs, tag = 'sflag constant byte address 0x0 - dummy sync flag']
  #allocation5 [shape = 's32[]', space=sflag, size = 0x4, offset = 0, fixed_abs, tag = 'sflag constant byte address 0x0 - dummy sync flag']
  %s0 = inlined_call_operand.hbm [shape: f32[1024,256], index: 0, kind: input, shape index: {}]
  %s1 = inlined_call_operand.hbm [shape: f32[1024,384], index: 1, kind: input, shape index: {}]
  %s2 = inlined_call_operand.hbm [shape: f32[1024,640], index: 2, kind: output, shape index: {}]
  %s3 = sld [smem:[#allocation0]]
  $region2: #{tpu_custom_call.1} parent=0
    _
  %s5 = ssub.s32 1, %s3
  %s6 = scalar_select 0, %s5, %s3
  $region1: #{tpu_custom_call.1} parent=0
    #allocation4 [shape = 'u32[3]{0}', space=smem, size = 0xc, scoped, tag = 'DMA stride descriptor']
    #allocation6 [shape = 'u32[3]{0}', space=smem, size = 0xc, scoped, tag = 'DMA stride descriptor']
    %s8 = sshll.u32 1, 14
    %s9 = sxor.u32 4294967295, %s8
    %13 = sst [smem:[#allocation4]] 256
    %s14 = scalar_lea.smem [#allocation4], 1
    %15 = sst [smem:[%s14]] 640
    %s16 = scalar_lea.smem [#allocation4], 2
    %17 = sst [smem:[%s16]] 16
    %19 = dma.general %s0, 32768, %s2, [#allocation2], 131072, [#allocation4], 0, 0
    %s20 = scalar_lea.hbm %s2, 256
    %s21 = scalar_lea.sflag [#allocation2], 1
    %s23 = sshll.u32 1, 14
    %s24 = sxor.u32 4294967295, %s23
    %28 = sst [smem:[#allocation6]] 384
    %s29 = scalar_lea.smem [#allocation6], 1
    %30 = sst [smem:[%s29]] 640
    %s31 = scalar_lea.smem [#allocation6], 2
    %32 = sst [smem:[%s31]] 24
    %34 = dma.general %s1, 49152, %s20, %s21, 131072, [#allocation6], 0, 0
    %s35 = smul.u32 8, 128
    %s36 = smul.u32 %s35, 2
    %s37 = sshll.u32 %s36, 4
    %38 = dma.done [#allocation2], %s37
    %s39 = smul.u32 %s35, 3
    %s40 = sshll.u32 %s39, 4
    %41 = dma.done %s21, %s40
  %42 = vsyncmov [#allocation2]
  %s43 = vpop.sfrf %42
  %p44 = scmp.eq.s32.totalorder %s43, 0
  %p45 = pneg %p44
  %47 = shalt.err (%p45)
  %s48 = scalar_lea.sflag [#allocation2], 1
  %49 = vsyncmov %s48
  %s50 = vpop.sfrf %49
  %p51 = scmp.eq.s32.totalorder %s50, 0
  %p52 = pneg %p51
  %54 = shalt.err (%p52)

</llo_original>
